<compile_context>
chip_gen: v5e
topology: v5e:2x2
jax: 0.10.0
libtpu: 0.0.40
codegen_flags: <defaults>
</compile_context>

<pallas_src>
import jax
import jax.numpy as jnp
from jax.experimental import pallas as pl
from jax.experimental.pallas import tpu as pltpu

BN_EPS = 1e-5


def _mlp_kernel(x_ref, w1_ref, b1_ref, w2_ref, b2_ref, s2_ref, t2_ref, o_ref):
    # x tile: [TBp, pack*F] f32, straight from HBM (no wrapper-side cast/pad pass).
    h = jnp.dot(x_ref[...], w1_ref[...],
                preferred_element_type=jnp.float32) + b1_ref[...]
    h = jnp.maximum(h, 0.0)                       # ReLU (ln1)
    # BN1 (eval-mode affine) is folded into w2/b2 in the wrapper.
    h2 = jnp.dot(h, w2_ref[...],
                 preferred_element_type=jnp.float32) + b2_ref[...]
    h2 = jnp.maximum(h2, 0.0)                     # ReLU (ln2)
    h2 = h2 * s2_ref[...] + t2_ref[...]           # BN2 as one fused mul-add
    # Exact sigmoid: compute is nowhere near the bottleneck, keep full parity.
    o_ref[...] = 1.0 / (1.0 + jnp.exp(-h2))


def _fold_and_pack(params, pack):
    """Eval-mode BN folds + lane-dense block-diagonal packing (done once)."""
    scale1 = params["g1"] * jax.lax.rsqrt(params["v1"] + BN_EPS)   # [1, H]
    shift1 = params["be1"] - params["m1"] * scale1                 # [1, H]
    # BN1 sits right before Linear2 in eval mode -> fold into W2 / b2.
    w2f = scale1.reshape(-1, 1) * params["w2"]                     # [H, O]
    b2f = shift1 @ params["w2"] + params["b2"]                     # [1, O]
    scale2 = params["g2"] * jax.lax.rsqrt(params["v2"] + BN_EPS)   # [1, O]
    shift2 = params["be2"] - params["m2"] * scale2                 # [1, O]

    # `pack` samples share one lane row of x, so each weight matrix becomes
    # `pack` copies on a block diagonal (columns of block p serve sample p).
    eye = jnp.eye(pack, dtype=jnp.float32)
    w1p = jnp.kron(eye, params["w1"])          # [pack*F, pack*H]
    w2p = jnp.kron(eye, w2f)                   # [pack*H, pack*O]
    b1p = jnp.tile(params["b1"], (1, pack))    # [1, pack*H]
    b2p = jnp.tile(b2f, (1, pack))             # [1, pack*O]
    s2p = jnp.tile(scale2, (1, pack))
    t2p = jnp.tile(shift2, (1, pack))
    return w1p, b1p, w2p, b2p, s2p, t2p


def my_mlp_forward(x, params, *, tb=16384):
    """x: [B, F] float32. params: dict of f32 arrays (see init_params).

    tb = target number of samples per grid step (~16K -> ~1 MiB of x per step).
    """
    B, F = x.shape
    H = params["w1"].shape[1]
    O = params["w2"].shape[1]

    # Lane-dense packing factor: put `pack` samples side by side on the lane
    # axis so x rows are ~128 lanes wide and the output rows are pack*O wide.
    pack = max(1, 128 // F) if F < 128 else 1

    w1p, b1p, w2p, b2p, s2p, t2p = _fold_and_pack(params, pack)
    Fp, Hp, Op = pack * F, pack * H, pack * O

    # ---- choose the packed-row batch tile --------------------------------
    Bp = pl.cdiv(B, pack)                       # packed rows needed
    TBp = max(1, min(tb // pack, Bp))
    if Bp >= 16:
        # Keep >= 2 grid steps so the "parallel" axis feeds both v7x cores.
        TBp = min(TBp, pl.cdiv(Bp, 2))
        TBp = max(8, (TBp // 8) * 8)            # f32 sublane alignment
    grid_b = pl.cdiv(Bp, TBp)
    Bp_pad = grid_b * TBp
    B_pad = Bp_pad * pack

    # Single pad (usually skipped) so packed rows tile evenly.  No dtype cast
    # in the wrapper: the kernel reads x as f32 directly.
    if B_pad != B:
        x = jnp.pad(x, ((0, B_pad - B), (0, 0)))
    xp = x.reshape(Bp_pad, Fp)                  # free, contiguous reshape

    const = lambda i: (0, 0)                    # params resident across grid
    param_bytes = 4 * (w1p.size + b1p.size + w2p.size + b2p.size
                       + s2p.size + t2p.size)
    cost = pl.CostEstimate(
        flops=2 * Bp_pad * (Fp * Hp + Hp * Op),
        transcendentals=Bp_pad * Op,
        bytes_accessed=Bp_pad * (Fp + Op) * 4 + param_bytes,
    )

    out = pl.pallas_call(
        _mlp_kernel,
        out_shape=jax.ShapeDtypeStruct((Bp_pad, Op), jnp.float32),
        grid_spec=pltpu.PrefetchScalarGridSpec(
            num_scalar_prefetch=0,
            grid=(grid_b,),
            in_specs=[
                pl.BlockSpec((TBp, Fp), lambda i: (i, 0)),   # packed x tile
                pl.BlockSpec((Fp, Hp), const),               # block-diag W1
                pl.BlockSpec((1, Hp), const),                # b1 (tiled)
                pl.BlockSpec((Hp, Op), const),               # block-diag W2 (BN1-folded)
                pl.BlockSpec((1, Op), const),                # b2 (BN1-folded, tiled)
                pl.BlockSpec((1, Op), const),                # BN2 scale (tiled)
                pl.BlockSpec((1, Op), const),                # BN2 shift (tiled)
            ],
            out_specs=pl.BlockSpec((TBp, Op), lambda i: (i, 0)),
        ),
        compiler_params=pltpu.CompilerParams(
            dimension_semantics=("parallel",),
            vmem_limit_bytes=32 * 1024 * 1024,   # headroom on v5e; default on v6e/v7x
        ),
        cost_estimate=cost,
    )(xp, w1p, b1p, w2p, b2p, s2p, t2p)

    out = out.reshape(B_pad, O)                 # free, contiguous reshape
    return out[:B] if B_pad != B else out


def init_params(key, in_features, hidden=10, out=5):
    """Deterministic parameter init mirroring a freshly-constructed MyMLP."""
    k1, k2, k3, k4 = jax.random.split(key, 4)

    def linear_init(kw, kb, fan_in, fan_out):
        # PyTorch nn.Linear default: U(-1/sqrt(fan_in), 1/sqrt(fan_in))
        bound = 1.0 / jnp.sqrt(jnp.float32(fan_in))
        w = jax.random.uniform(kw, (fan_in, fan_out), jnp.float32, -bound, bound)
        b = jax.random.uniform(kb, (1, fan_out), jnp.float32, -bound, bound)
        return w, b

    w1, b1 = linear_init(k1, k2, in_features, hidden)
    w2, b2 = linear_init(k3, k4, hidden, out)

    def bn_init(n):
        # PyTorch BatchNorm1d defaults: gamma=1, beta=0, mean=0, var=1
        return (jnp.ones((1, n), jnp.float32),   # gamma
                jnp.zeros((1, n), jnp.float32),  # beta
                jnp.zeros((1, n), jnp.float32),  # running_mean
                jnp.ones((1, n), jnp.float32))   # running_var

    g1, be1, m1, v1 = bn_init(hidden)
    g2, be2, m2, v2 = bn_init(out)

    return dict(w1=w1, b1=b1, g1=g1, be1=be1, m1=m1, v1=v1,
                w2=w2, b2=b2, g2=g2, be2=be2, m2=m2, v2=v2)


def _reference_forward(x, p):
    """Pure-JAX f32 reference (exact eval-mode semantics)."""
    h = x @ p["w1"] + p["b1"]
    h = jnp.maximum(h, 0.0)
    h = (h - p["m1"]) / jnp.sqrt(p["v1"] + BN_EPS) * p["g1"] + p["be1"]
    h2 = h @ p["w2"] + p["b2"]
    h2 = jnp.maximum(h2, 0.0)
    h2 = (h2 - p["m2"]) / jnp.sqrt(p["v2"] + BN_EPS) * p["g2"] + p["be2"]
    return jax.nn.sigmoid(h2)


if __name__ == "__main__":
    key = jax.random.PRNGKey(0)
    k_params, k_x = jax.random.split(key)

    B, F = 256, 16
    params = init_params(k_params, in_features=F)
    x = jax.random.normal(k_x, (B, F), jnp.float32)

    out = my_mlp_forward(x, params)            # 2-step packed batch grid
    out = jax.block_until_ready(out)

    ref = _reference_forward(x, params)
    assert out.shape == (B, 5)
    # All-f32 kernel with exact sigmoid -> tight agreement with the reference.
    assert jnp.allclose(out, ref, atol=1e-4, rtol=1e-4), \
        f"max abs diff {jnp.max(jnp.abs(out - ref))}"

    print("KERNEL_OK")
</pallas_src>

<mosaic_0001>
module attributes {stable_mosaic.version = 11 : i64} {
  func.func @_mlp_kernel(%arg0: i32, %arg1: memref<16x128xf32, #tpu.memory_space<vmem>>, %arg2: memref<128x80xf32, #tpu.memory_space<vmem>>, %arg3: memref<1x80xf32, #tpu.memory_space<vmem>>, %arg4: memref<80x40xf32, #tpu.memory_space<vmem>>, %arg5: memref<1x40xf32, #tpu.memory_space<vmem>>, %arg6: memref<1x40xf32, #tpu.memory_space<vmem>>, %arg7: memref<1x40xf32, #tpu.memory_space<vmem>>, %arg8: memref<16x40xf32, #tpu.memory_space<vmem>>) attributes {dimension_semantics = [#tpu.dimension_semantics<parallel>], iteration_bounds = array<i64: 2>, scalar_prefetch = 0 : i64, scratch_operands = 0 : i64, tpu.core_type = #tpu.core_type<tc>, window_params = [{transform_indices = @transform_0, window_bounds = array<i64: 16, 128>}, {pipeline_mode = #tpu.pipeline_mode<synchronous>, transform_indices = @transform_1, window_bounds = array<i64: 128, 80>}, {pipeline_mode = #tpu.pipeline_mode<synchronous>, transform_indices = @transform_2, window_bounds = array<i64: 1, 80>}, {pipeline_mode = #tpu.pipeline_mode<synchronous>, transform_indices = @transform_3, window_bounds = array<i64: 80, 40>}, {pipeline_mode = #tpu.pipeline_mode<synchronous>, transform_indices = @transform_4, window_bounds = array<i64: 1, 40>}, {pipeline_mode = #tpu.pipeline_mode<synchronous>, transform_indices = @transform_5, window_bounds = array<i64: 1, 40>}, {pipeline_mode = #tpu.pipeline_mode<synchronous>, transform_indices = @transform_6, window_bounds = array<i64: 1, 40>}, {transform_indices = @transform_7, window_bounds = array<i64: 16, 40>}]} {
    %c0 = arith.constant 0 : index
    %c0_0 = arith.constant 0 : index
    %0 = vector.load %arg1[%c0, %c0_0] : memref<16x128xf32, #tpu.memory_space<vmem>>, vector<16x128xf32>
    %c0_1 = arith.constant 0 : index
    %c0_2 = arith.constant 0 : index
    %1 = vector.load %arg2[%c0_1, %c0_2] : memref<128x80xf32, #tpu.memory_space<vmem>>, vector<128x80xf32>
    %cst = arith.constant dense<0.000000e+00> : vector<16x80xf32>
    %2 = tpu.matmul %0, %1, %cst {dimension_numbers = #tpu.dot_dimension_numbers<[1], [0], [0], [1], [0, 0, 1, 1], [], []>} : vector<16x128xf32>, vector<128x80xf32>, vector<16x80xf32> -> vector<16x80xf32>
    %c0_3 = arith.constant 0 : index
    %c0_4 = arith.constant 0 : index
    %3 = vector.load %arg3[%c0_3, %c0_4] : memref<1x80xf32, #tpu.memory_space<vmem>>, vector<1x80xf32>
    %4 = vector.broadcast %3 : vector<1x80xf32> to vector<16x80xf32>
    %5 = arith.addf %2, %4 : vector<16x80xf32>
    %cst_5 = arith.constant 0.000000e+00 : f32
    %6 = vector.broadcast %cst_5 : f32 to vector<16x80xf32>
    %7 = arith.maximumf %5, %6 : vector<16x80xf32>
    %c0_6 = arith.constant 0 : index
    %c0_7 = arith.constant 0 : index
    %8 = vector.load %arg4[%c0_6, %c0_7] : memref<80x40xf32, #tpu.memory_space<vmem>>, vector<80x40xf32>
    %cst_8 = arith.constant dense<0.000000e+00> : vector<16x40xf32>
    %9 = tpu.matmul %7, %8, %cst_8 {dimension_numbers = #tpu.dot_dimension_numbers<[1], [0], [0], [1], [0, 0, 1, 1], [], []>} : vector<16x80xf32>, vector<80x40xf32>, vector<16x40xf32> -> vector<16x40xf32>
    %c0_9 = arith.constant 0 : index
    %c0_10 = arith.constant 0 : index
    %10 = vector.load %arg5[%c0_9, %c0_10] : memref<1x40xf32, #tpu.memory_space<vmem>>, vector<1x40xf32>
    %11 = vector.broadcast %10 : vector<1x40xf32> to vector<16x40xf32>
    %12 = arith.addf %9, %11 : vector<16x40xf32>
    %cst_11 = arith.constant 0.000000e+00 : f32
    %13 = vector.broadcast %cst_11 : f32 to vector<16x40xf32>
    %14 = arith.maximumf %12, %13 : vector<16x40xf32>
    %c0_12 = arith.constant 0 : index
    %c0_13 = arith.constant 0 : index
    %15 = vector.load %arg6[%c0_12, %c0_13] : memref<1x40xf32, #tpu.memory_space<vmem>>, vector<1x40xf32>
    %16 = vector.broadcast %15 : vector<1x40xf32> to vector<16x40xf32>
    %17 = arith.mulf %14, %16 : vector<16x40xf32>
    %c0_14 = arith.constant 0 : index
    %c0_15 = arith.constant 0 : index
    %18 = vector.load %arg7[%c0_14, %c0_15] : memref<1x40xf32, #tpu.memory_space<vmem>>, vector<1x40xf32>
    %19 = vector.broadcast %18 : vector<1x40xf32> to vector<16x40xf32>
    %20 = arith.addf %17, %19 : vector<16x40xf32>
    %cst_16 = arith.constant 0.000000e+00 : f32
    %21 = vector.broadcast %cst_16 : f32 to vector<16x40xf32>
    %22 = arith.subf %21, %20 : vector<16x40xf32>
    %23 = math.exp %22 : vector<16x40xf32>
    %cst_17 = arith.constant 1.000000e+00 : f32
    %24 = vector.broadcast %cst_17 : f32 to vector<16x40xf32>
    %25 = arith.addf %24, %23 : vector<16x40xf32>
    %cst_18 = arith.constant 1.000000e+00 : f32
    %26 = vector.broadcast %cst_18 : f32 to vector<16x40xf32>
    %27 = arith.divf %26, %25 : vector<16x40xf32>
    %c0_19 = arith.constant 0 : index
    %c0_20 = arith.constant 0 : index
    %28 = vector.load %arg8[%c0_19, %c0_20] : memref<16x40xf32, #tpu.memory_space<vmem>>, vector<16x40xf32>
    tpu.vector_store %arg8[%c0_19, %c0_20], %27 {strides = array<i32>} : memref<16x40xf32, #tpu.memory_space<vmem>>, vector<16x40xf32>,
    return
  }
  func.func @transform_0(%arg0: i32) -> (i32, i32) {
    %c0_i32 = arith.constant 0 : i32
    %c0_i32_0 = arith.constant 0 : i32
    return %arg0, %c0_i32 : i32, i32
  }
  func.func @transform_1(%arg0: i32) -> (i32, i32) {
    %c0_i32 = arith.constant 0 : i32
    %c0_i32_0 = arith.constant 0 : i32
    %c0_i32_1 = arith.constant 0 : i32
    return %c0_i32, %c0_i32_0 : i32, i32
  }
  func.func @transform_2(%arg0: i32) -> (i32, i32) {
    %c0_i32 = arith.constant 0 : i32
    %c0_i32_0 = arith.constant 0 : i32
    %c0_i32_1 = arith.constant 0 : i32
    return %c0_i32, %c0_i32_0 : i32, i32
  }
  func.func @transform_3(%arg0: i32) -> (i32, i32) {
    %c0_i32 = arith.constant 0 : i32
    %c0_i32_0 = arith.constant 0 : i32
    %c0_i32_1 = arith.constant 0 : i32
    return %c0_i32, %c0_i32_0 : i32, i32
  }
  func.func @transform_4(%arg0: i32) -> (i32, i32) {
    %c0_i32 = arith.constant 0 : i32
    %c0_i32_0 = arith.constant 0 : i32
    %c0_i32_1 = arith.constant 0 : i32
    return %c0_i32, %c0_i32_0 : i32, i32
  }
  func.func @transform_5(%arg0: i32) -> (i32, i32) {
    %c0_i32 = arith.constant 0 : i32
    %c0_i32_0 = arith.constant 0 : i32
    %c0_i32_1 = arith.constant 0 : i32
    return %c0_i32, %c0_i32_0 : i32, i32
  }
  func.func @transform_6(%arg0: i32) -> (i32, i32) {
    %c0_i32 = arith.constant 0 : i32
    %c0_i32_0 = arith.constant 0 : i32
    %c0_i32_1 = arith.constant 0 : i32
    return %c0_i32, %c0_i32_0 : i32, i32
  }
  func.func @transform_7(%arg0: i32) -> (i32, i32) {
    %c0_i32 = arith.constant 0 : i32
    %c0_i32_0 = arith.constant 0 : i32
    return %arg0, %c0_i32 : i32, i32
  }
}

</mosaic_0001>

<llo_original>
// kernel: tpu_custom_call.1
$region0: #{tpu_custom_call.1}
  #allocation0 [shape = 'u32[]', space=smem, size = 0x4, offset = 0x4, fixed_abs, tag = 'smem constant byte address 0x4 - core index']
  #allocation1 [shape = 'u32[72,128]{1,0:T(1,128)}', space=vmem, size = 0x9000, scoped, tag = 'internal scratch']
  %s0 = inlined_call_operand.vmem [shape: f32[32,128], index: 0, kind: input, shape index: {}]
  %s1 = inlined_call_operand.vmem [shape: f32[128,80], index: 1, kind: input, shape index: {}]
  %s2 = inlined_call_operand.vmem [shape: f32[1,80], index: 2, kind: input, shape index: {}]
  %s3 = inlined_call_operand.vmem [shape: f32[80,40], index: 3, kind: input, shape index: {}]
  %s4 = inlined_call_operand.vmem [shape: f32[1,40], index: 4, kind: input, shape index: {}]
  %s5 = inlined_call_operand.vmem [shape: f32[1,40], index: 5, kind: input, shape index: {}]
  %s6 = inlined_call_operand.vmem [shape: f32[1,40], index: 6, kind: input, shape index: {}]
  %s7 = inlined_call_operand.hbm [shape: f32[32,40], index: 7, kind: output, shape index: {}]
  %s8 = sld [smem:[#allocation0]]
  $region61: #{tpu_custom_call.1} parent=0
    _
  %s10 = ssub.s32 1, %s8
  %s11 = scalar_select 0, %s10, %s8
  $region1: #{tpu_custom_call.1} parent=0
    #allocation2 [shape = 'u8[16384]{0}', space=vmem, size = 0x4000, scoped, tag = 'output window, operand 0']
    #allocation3 [shape = 's32[2]{0}', space=sflag, size = 0x8, scoped, tag = 'scoped memory for tpu_custom_call.1']
    %12 = vsyncpa [#allocation3], 0
    %s13 = scalar_lea.sflag [#allocation3], 1
    %14 = vsyncpa %s13, 0
    loop: start=0, step=1, limit=4
    $region2: #{tpu_custom_call.1} parent=1 // loop_pre_header
      _
    $region3: #{tpu_custom_call.1} parent=1 // loop_header
      %s16 = sphi 0, %s20
      %p17 = scmp.ge.s32.totalorder %s16, 4
      %s26 = sphi 0, %s28
      %s29 = sphi 0, %s26
      %s30 = sphi 0, %s29
      %s46 = sphi 0, %s30
      %s50 = sphi 0, %s50
      %s52 = sphi 0, %s50
      %s53 = sphi 0, %s52
      %s67 = sphi 0, %s53
      %s71 = sphi 0, %s71
      %s73 = sphi 0, %s71
      %s74 = sphi 0, %s73
      %s88 = sphi 0, %s74
      %s92 = sphi 0, %s92
      %s94 = sphi 0, %s92
      %s95 = sphi 0, %s94
      %s109 = sphi 0, %s95
      %s113 = sphi 0, %s113
      %s115 = sphi 0, %s113
      %s116 = sphi 0, %s115
      %s130 = sphi 0, %s116
      %s134 = sphi 0, %s134
      %s136 = sphi 0, %s134
      %s137 = sphi 0, %s136
      %s151 = sphi 0, %s137
      %s155 = sphi 0, %s155
      %s157 = sphi 0, %s155
      %s158 = sphi 0, %s157
      %s172 = sphi 0, %s158
      %s178 = sphi 0, %s180
      %s181 = sphi 0, %s178
      %s182 = sphi 0, %s181
      %s198 = sphi 0, %s182
    $region4: #{tpu_custom_call.1} parent=1 // loop_header_branch
      %19 = sbr.rel (%p17) target = $region8
    $region5: #{tpu_custom_call.1} parent=1 // loop_body
      %s21 = ssub.s32 %s16, 1
      %s22 = ssub.s32 %s16, 2
      %s23 = sadd.s32 %s16, 1
      %s24 = ssub.s32 %s16, %s23
      %p25 = scmp.eq.s32.totalorder %s24, 0
      %s27 = sadd.s32 %s26, 1
      %s28 = scalar_select %p25, %s26, %s27
      %p31 = pneg %p25
      %p32 = scmp.eq.s32.totalorder %s16, 1
      %p33 = por %p31, %p32
      %p34 = scmp.ne.s32.totalorder %s26, %s29
      %p35 = scmp.eq.s32.totalorder %s16, 0
      %p36 = por %p34, %p35
      %p37 = scmp.ne.s32.totalorder %s26, %s29
      %p38 = scmp.eq.s32.totalorder %s21, 1
      %p39 = por %p37, %p38
      %p40 = scmp.ne.s32.totalorder %s29, %s30
      %p41 = scmp.eq.s32.totalorder %s21, 0
      %p42 = por %p40, %p41
      %p43 = scmp.ne.s32.totalorder %s29, %s30
      %p44 = scmp.eq.s32.totalorder %s22, 1
      %p45 = por %p43, %p44
      %p47 = scmp.ne.s32.totalorder %s30, %s46
      %p48 = scmp.eq.s32.totalorder %s22, 0
      %p49 = por %p47, %p48
      %s51 = sadd.s32 %s50, 1
      %p54 = scmp.eq.s32.totalorder %s16, 1
      %p55 = scmp.ne.s32.totalorder %s50, %s52
      %p56 = scmp.eq.s32.totalorder %s16, 0
      %p57 = por %p55, %p56
      %p58 = scmp.ne.s32.totalorder %s50, %s52
      %p59 = scmp.eq.s32.totalorder %s21, 1
      %p60 = por %p58, %p59
      %p61 = scmp.ne.s32.totalorder %s52, %s53
      %p62 = scmp.eq.s32.totalorder %s21, 0
      %p63 = por %p61, %p62
      %p64 = scmp.ne.s32.totalorder %s52, %s53
      %p65 = scmp.eq.s32.totalorder %s22, 1
      %p66 = por %p64, %p65
      %p68 = scmp.ne.s32.totalorder %s53, %s67
      %p69 = scmp.eq.s32.totalorder %s22, 0
      %p70 = por %p68, %p69
      %s72 = sadd.s32 %s71, 1
      %p75 = scmp.eq.s32.totalorder %s16, 1
      %p76 = scmp.ne.s32.totalorder %s71, %s73
      %p77 = scmp.eq.s32.totalorder %s16, 0
      %p78 = por %p76, %p77
      %p79 = scmp.ne.s32.totalorder %s71, %s73
      %p80 = scmp.eq.s32.totalorder %s21, 1
      %p81 = por %p79, %p80
      %p82 = scmp.ne.s32.totalorder %s73, %s74
      %p83 = scmp.eq.s32.totalorder %s21, 0
      %p84 = por %p82, %p83
      %p85 = scmp.ne.s32.totalorder %s73, %s74
      %p86 = scmp.eq.s32.totalorder %s22, 1
      %p87 = por %p85, %p86
      %p89 = scmp.ne.s32.totalorder %s74, %s88
      %p90 = scmp.eq.s32.totalorder %s22, 0
      %p91 = por %p89, %p90
      %s93 = sadd.s32 %s92, 1
      %p96 = scmp.eq.s32.totalorder %s16, 1
      %p97 = scmp.ne.s32.totalorder %s92, %s94
      %p98 = scmp.eq.s32.totalorder %s16, 0
      %p99 = por %p97, %p98
      %p100 = scmp.ne.s32.totalorder %s92, %s94
      %p101 = scmp.eq.s32.totalorder %s21, 1
      %p102 = por %p100, %p101
      %p103 = scmp.ne.s32.totalorder %s94, %s95
      %p104 = scmp.eq.s32.totalorder %s21, 0
      %p105 = por %p103, %p104
      %p106 = scmp.ne.s32.totalorder %s94, %s95
      %p107 = scmp.eq.s32.totalorder %s22, 1
      %p108 = por %p106, %p107
      %p110 = scmp.ne.s32.totalorder %s95, %s109
      %p111 = scmp.eq.s32.totalorder %s22, 0
      %p112 = por %p110, %p111
      %s114 = sadd.s32 %s113, 1
      %p117 = scmp.eq.s32.totalorder %s16, 1
      %p118 = scmp.ne.s32.totalorder %s113, %s115
      %p119 = scmp.eq.s32.totalorder %s16, 0
      %p120 = por %p118, %p119
      %p121 = scmp.ne.s32.totalorder %s113, %s115
      %p122 = scmp.eq.s32.totalorder %s21, 1
      %p123 = por %p121, %p122
      %p124 = scmp.ne.s32.totalorder %s115, %s116
      %p125 = scmp.eq.s32.totalorder %s21, 0
      %p126 = por %p124, %p125
      %p127 = scmp.ne.s32.totalorder %s115, %s116
      %p128 = scmp.eq.s32.totalorder %s22, 1
      %p129 = por %p127, %p128
      %p131 = scmp.ne.s32.totalorder %s116, %s130
      %p132 = scmp.eq.s32.totalorder %s22, 0
      %p133 = por %p131, %p132
      %s135 = sadd.s32 %s134, 1
      %p138 = scmp.eq.s32.totalorder %s16, 1
      %p139 = scmp.ne.s32.totalorder %s134, %s136
      %p140 = scmp.eq.s32.totalorder %s16, 0
      %p141 = por %p139, %p140
      %p142 = scmp.ne.s32.totalorder %s134, %s136
      %p143 = scmp.eq.s32.totalorder %s21, 1
      %p144 = por %p142, %p143
      %p145 = scmp.ne.s32.totalorder %s136, %s137
      %p146 = scmp.eq.s32.totalorder %s21, 0
      %p147 = por %p145, %p146
      %p148 = scmp.ne.s32.totalorder %s136, %s137
      %p149 = scmp.eq.s32.totalorder %s22, 1
      %p150 = por %p148, %p149
      %p152 = scmp.ne.s32.totalorder %s137, %s151
      %p153 = scmp.eq.s32.totalorder %s22, 0
      %p154 = por %p152, %p153
      %s156 = sadd.s32 %s155, 1
      %p159 = scmp.eq.s32.totalorder %s16, 1
      %p160 = scmp.ne.s32.totalorder %s155, %s157
      %p161 = scmp.eq.s32.totalorder %s16, 0
      %p162 = por %p160, %p161
      %p163 = scmp.ne.s32.totalorder %s155, %s157
      %p164 = scmp.eq.s32.totalorder %s21, 1
      %p165 = por %p163, %p164
      %p166 = scmp.ne.s32.totalorder %s157, %s158
      %p167 = scmp.eq.s32.totalorder %s21, 0
      %p168 = por %p166, %p167
      %p169 = scmp.ne.s32.totalorder %s157, %s158
      %p170 = scmp.eq.s32.totalorder %s22, 1
      %p171 = por %p169, %p170
      %p173 = scmp.ne.s32.totalorder %s158, %s172
      %p174 = scmp.eq.s32.totalorder %s22, 0
      %p175 = por %p173, %p174
      %s176 = ssub.s32 %s16, %s23
      %p177 = scmp.eq.s32.totalorder %s176, 0
      %s179 = sadd.s32 %s178, 1
      %s180 = scalar_select %p177, %s178, %s179
      %p183 = pneg %p177
      %p184 = scmp.eq.s32.totalorder %s16, 1
      %p185 = por %p183, %p184
      %p186 = scmp.ne.s32.totalorder %s178, %s181
      %p187 = scmp.eq.s32.totalorder %s16, 0
      %p188 = por %p186, %p187
      %p189 = scmp.ne.s32.totalorder %s178, %s181
      %p190 = scmp.eq.s32.totalorder %s21, 1
      %p191 = por %p189, %p190
      %p192 = scmp.ne.s32.totalorder %s181, %s182
      %p193 = scmp.eq.s32.totalorder %s21, 0
      %p194 = por %p192, %p193
      %p195 = scmp.ne.s32.totalorder %s181, %s182
      %p196 = scmp.eq.s32.totalorder %s22, 1
      %p197 = por %p195, %p196
      %p199 = scmp.ne.s32.totalorder %s182, %s198
      %p200 = scmp.eq.s32.totalorder %s22, 0
      %p201 = por %p199, %p200
      %p202 = scmp.le.s32.totalorder 1, %s16
      %p203 = scmp.lt.s32.totalorder %s16, 3
      %p204 = pnand %p202, %p203
      %p205 = pneg %p204
      // Predicated region
      $region9: #{tpu_custom_call.1} parent=5 // pred_check
        _
      $region10: #{tpu_custom_call.1} parent=5 // pred_check_branch
        %207 = sbr.rel (%p204) target = $region12
      $region11: #{tpu_custom_call.1} parent=5 // pred_region
        %s208 = ssub.s32 %s16, 1
        // Predicated region
        $region13: #{tpu_custom_call.1} parent=11 // pred_check
          %p209 = pneg %p63
        $region14: #{tpu_custom_call.1} parent=11 // pred_check_branch
          %211 = sbr.rel (%p209) target = $region16
        $region15: #{tpu_custom_call.1} parent=11 // pred_region
          _
        $region16: #{tpu_custom_call.1} parent=11 // pred_fallthru
          _
        // Predicated region
        $region17: #{tpu_custom_call.1} parent=11 // pred_check
          %p212 = pneg %p84
        $region18: #{tpu_custom_call.1} parent=11 // pred_check_branch
          %214 = sbr.rel (%p212) target = $region20
        $region19: #{tpu_custom_call.1} parent=11 // pred_region
          _
        $region20: #{tpu_custom_call.1} parent=11 // pred_fallthru
          _
        // Predicated region
        $region21: #{tpu_custom_call.1} parent=11 // pred_check
          %p215 = pneg %p105
        $region22: #{tpu_custom_call.1} parent=11 // pred_check_branch
          %217 = sbr.rel (%p215) target = $region24
        $region23: #{tpu_custom_call.1} parent=11 // pred_region
          _
        $region24: #{tpu_custom_call.1} parent=11 // pred_fallthru
          _
        // Predicated region
        $region25: #{tpu_custom_call.1} parent=11 // pred_check
          %p218 = pneg %p126
        $region26: #{tpu_custom_call.1} parent=11 // pred_check_branch
          %220 = sbr.rel (%p218) target = $region28
        $region27: #{tpu_custom_call.1} parent=11 // pred_region
          _
        $region28: #{tpu_custom_call.1} parent=11 // pred_fallthru
          _
        // Predicated region
        $region29: #{tpu_custom_call.1} parent=11 // pred_check
          %p221 = pneg %p147
        $region30: #{tpu_custom_call.1} parent=11 // pred_check_branch
          %223 = sbr.rel (%p221) target = $region32
        $region31: #{tpu_custom_call.1} parent=11 // pred_region
          _
        $region32: #{tpu_custom_call.1} parent=11 // pred_fallthru
          _
        // Predicated region
        $region33: #{tpu_custom_call.1} parent=11 // pred_check
          %p224 = pneg %p168
        $region34: #{tpu_custom_call.1} parent=11 // pred_check_branch
          %226 = sbr.rel (%p224) target = $region36
        $region35: #{tpu_custom_call.1} parent=11 // pred_region
          _
        $region36: #{tpu_custom_call.1} parent=11 // pred_fallthru
          _
      $region12: #{tpu_custom_call.1} parent=5 // pred_fallthru
        _
      %p227 = scmp.lt.s32.totalorder %s16, 2
      // Predicated region
      $region37: #{tpu_custom_call.1} parent=5 // pred_check
        %p228 = pneg %p227
      $region38: #{tpu_custom_call.1} parent=5 // pred_check_branch
        %230 = sbr.rel (%p228) target = $region40
      $region39: #{tpu_custom_call.1} parent=5 // pred_region
        // Predicated region
        $region41: #{tpu_custom_call.1} parent=39 // pred_check
          %p231 = pneg %p36
        $region42: #{tpu_custom_call.1} parent=39 // pred_check_branch
          %233 = sbr.rel (%p231) target = $region44
        $region43: #{tpu_custom_call.1} parent=39 // pred_region
          %s234 = smul.u32 2, %s16
          %p235 = scmp.lt.s32.totalorder %s234, 3
          %s236 = scalar_select %p235, %s234, 3
          %s237 = smul.addr %s236, 8
          %s238 = scalar_lea.vmem %s0, %s237
          %s239 = smul.u32 2, %s16
        $region44: #{tpu_custom_call.1} parent=39 // pred_fallthru
          _
      $region40: #{tpu_custom_call.1} parent=5 // pred_fallthru
        _
      %p240 = scmp.le.s32.totalorder 1, %s16
      %p241 = scmp.lt.s32.totalorder %s16, 3
      %p242 = pnand %p240, %p241
      %p243 = pneg %p242
      // Predicated region
      $region45: #{tpu_custom_call.1} parent=5 // pred_check
        _
      $region46: #{tpu_custom_call.1} parent=5 // pred_check_branch
        %245 = sbr.rel (%p242) target = $region48
      $region47: #{tpu_custom_call.1} parent=5 // pred_region
        %s246 = ssub.s32 %s16, 1
        %s247 = smul.u32 2, %s21
        %p248 = scmp.lt.s32.totalorder %s247, 3
        %s249 = scalar_select %p248, %s247, 3
        %s250 = smul.addr %s249, 8
        %s251 = scalar_lea.vmem %s0, %s250
        %p252 = pneg %p42
        %p253 = pneg %p39
        %p254 = pneg %p63
        %p255 = pneg %p60
        %p256 = pneg %p84
        %p257 = pneg %p81
        %p258 = pneg %p105
        %p259 = pneg %p102
        %p260 = pneg %p126
        %p261 = pneg %p123
        %p262 = pneg %p147
        %p263 = pneg %p144
        %p264 = pneg %p168
        %p265 = pneg %p165
        %p266 = pneg %p194
        %p267 = pneg %p191
        %s268 = sand.u32 %s181, 1
        %s269 = scalar_lea.sflag [#allocation3], %s268
        %s270 = sand.u32 %s181, 1
        %s271 = smul.addr %s270, 16
        %s272 = scalar_lea.vmem [#allocation2], %s271
        %s273 = smul.u32 2, %s21
        %p274 = scmp.lt.s32.totalorder %s273, 3
        %s275 = scalar_select %p274, %s273, 3
        %s276 = smul.addr %s275, 8
        %s277 = scalar_lea.vmem %s0, %s276
        %s278 = smul.u32 2, %s21
        %s279 = smul.u32 2, %s21
        %v280 = vld [vmem:[%s277] sm:$0xff]
        %v281 = vld [vmem:[%s277 + $0x8] sm:$0xff]
        %v282 = vld [vmem:[%s1] sm:$0xff]
        %v283 = vld [vmem:[%s1 + $0x8] sm:$0xff]
        %v284 = vld [vmem:[%s1 + $0x10] sm:$0xff]
        %v285 = vld [vmem:[%s1 + $0x18] sm:$0xff]
        %v286 = vld [vmem:[%s1 + $0x20] sm:$0xff]
        %v287 = vld [vmem:[%s1 + $0x28] sm:$0xff]
        %v288 = vld [vmem:[%s1 + $0x30] sm:$0xff]
        %v289 = vld [vmem:[%s1 + $0x38] sm:$0xff]
        %v290 = vld [vmem:[%s1 + $0x40] sm:$0xff]
        %v291 = vld [vmem:[%s1 + $0x48] sm:$0xff]
        %v292 = vld [vmem:[%s1 + $0x50] sm:$0xff]
        %v293 = vld [vmem:[%s1 + $0x58] sm:$0xff]
        %v294 = vld [vmem:[%s1 + $0x60] sm:$0xff]
        %v295 = vld [vmem:[%s1 + $0x68] sm:$0xff]
        %v296 = vld [vmem:[%s1 + $0x70] sm:$0xff]
        %v297 = vld [vmem:[%s1 + $0x78] sm:$0xff]
        %v298 = vld [vmem:[%s2] sm:$0x1]
        %v300 = vperm.slane %v298, 0
        %302 = vmatpush.msra.mxu0 %v297
        %303 = vmatpush.msra.mxu0 %v296
        %304 = vmatpush.msra.mxu0 %v295
        %305 = vmatpush.msra.mxu0 %v294
        %306 = vmatpush.msra.mxu0 %v293
        %307 = vmatpush.msra.mxu0 %v292
        %308 = vmatpush.msra.mxu0 %v291
        %309 = vmatpush.msra.mxu0 %v290
        %310 = vmatpush.msra.mxu0 %v289
        %311 = vmatpush.msra.mxu0 %v288
        %312 = vmatpush.msra.mxu0 %v287
        %313 = vmatpush.msra.mxu0 %v286
        %314 = vmatpush.msra.mxu0 %v285
        %315 = vmatpush.msra.mxu0 %v284
        %316 = vmatpush.msra.mxu0 %v283
        %317 = vmatpush.msra.mxu0 %v282
        %318 = vmatmul.f32.gmra.mxu0 %v280
        %v319 = vpop.f32.mrf.mxu0
        %v320 = vadd.f32 %v300, %v319
        %321 = vmatmul.f32.gmra.mxu0 %v281
        %v322 = vpop.f32.mrf.mxu0
        %v323 = vadd.f32 %v300, %v322
        %324 = vdwg.mxu0
        %v325 = vmax.f32 %v320, 0.0
        %v326 = vmax.f32 %v323, 0.0
        %v327 = vld [vmem:[%s3] sm:$0xff]
        %v328 = vld [vmem:[%s3 + $0x8] sm:$0xff]
        %v329 = vld [vmem:[%s3 + $0x10] sm:$0xff]
        %v330 = vld [vmem:[%s3 + $0x18] sm:$0xff]
        %v331 = vld [vmem:[%s3 + $0x20] sm:$0xff]
        %v332 = vld [vmem:[%s3 + $0x28] sm:$0xff]
        %v333 = vld [vmem:[%s3 + $0x30] sm:$0xff]
        %v334 = vld [vmem:[%s3 + $0x38] sm:$0xff]
        %v335 = vld [vmem:[%s3 + $0x40] sm:$0xff]
        %v336 = vld [vmem:[%s3 + $0x48] sm:$0xff]
        %v337 = vld [vmem:[%s4] sm:$0x1]
        %v339 = vperm.slane %v337, 0
        %vm341 = vcmask 654336
        %v343 = vsel %vm341, %v325, 0
        %v346 = vsel %vm341, %v326, 0
        %348 = vmatpush.msra.mxu0 0.0
        %349 = vmatpush.msra.mxu0 0.0
        %350 = vmatpush.msra.mxu0 0.0
        %351 = vmatpush.msra.mxu0 0.0
        %352 = vmatpush.msra.mxu0 0.0
        %353 = vmatpush.msra.mxu0 0.0
        %354 = vmatpush.msra.mxu0 %v336
        %355 = vmatpush.msra.mxu0 %v335
        %356 = vmatpush.msra.mxu0 %v334
        %357 = vmatpush.msra.mxu0 %v333
        %358 = vmatpush.msra.mxu0 %v332
        %359 = vmatpush.msra.mxu0 %v331
        %360 = vmatpush.msra.mxu0 %v330
        %361 = vmatpush.msra.mxu0 %v329
        %362 = vmatpush.msra.mxu0 %v328
        %363 = vmatpush.msra.mxu0 %v327
        %364 = vmatmul.f32.gmra.mxu0 %v343
        %v365 = vpop.f32.mrf.mxu0
        %v366 = vadd.f32 %v339, %v365
        %367 = vmatmul.f32.gmra.mxu0 %v346
        %v368 = vpop.f32.mrf.mxu0
        %v369 = vadd.f32 %v339, %v368
        %370 = vdwg.mxu0
        %v371 = vmax.f32 %v366, 0.0
        %v372 = vmax.f32 %v369, 0.0
        %v373 = vld [vmem:[%s5] sm:$0x1]
        %v375 = vperm.slane %v373, 0
        %v377 = vmul.f32 %v371, %v375
        %v378 = vmul.f32 %v372, %v375
        %v379 = vld [vmem:[%s6] sm:$0x1]
        %v381 = vperm.slane %v379, 0
        %v383 = vadd.f32 %v377, %v381
        %v384 = vadd.f32 %v378, %v381
        %v385 = vsub.f32 0.0, %v383
        %v386 = vsub.f32 0.0, %v384
        %v387 = vmul.f32 %v385, 1.442695
        %v388 = vpow.pop %v387
        %v389 = vmul.f32 %v386, 1.442695
        %v390 = vpow.pop %v389
        %v391 = vadd.f32 %v388, 1.0
        %v392 = vadd.f32 %v390, 1.0
        %v393 = vrcp.pop %v391
        %v394 = vmul.f32 %v391, %v393
        %v395 = vsub.f32 1.0, %v394
        %v396 = vmul.f32 %v393, %v395
        %v397 = vadd.f32 %v393, %v396
        %vm398 = vweird.f32 %v391
        %vm399 = vweird.f32 %v393
        %vm400 = vmor %vm398, %vm399
        %v401 = vsel %vm400, %v393, %v397
        %v402 = vand.u32 2147483647, %v391
        %vm403 = vcmp.eq.f32.partialorder %v402, 8.507059e+37
        %v404 = vand.u32 %v391, 2147483648
        %v405 = vor.u32 1.1754944e-38, %v404
        %v406 = vsel %vm403, %v405, %v401
        %v407 = vmul.f32 1.0, %v406
        %v408 = vrcp.pop %v392
        %v409 = vmul.f32 %v392, %v408
        %v410 = vsub.f32 1.0, %v409
        %v411 = vmul.f32 %v408, %v410
        %v412 = vadd.f32 %v408, %v411
        %vm413 = vweird.f32 %v392
        %vm414 = vweird.f32 %v408
        %vm415 = vmor %vm413, %vm414
        %v416 = vsel %vm415, %v408, %v412
        %v417 = vand.u32 2147483647, %v392
        %vm418 = vcmp.eq.f32.partialorder %v417, 8.507059e+37
        %v419 = vand.u32 %v392, 2147483648
        %v420 = vor.u32 1.1754944e-38, %v419
        %v421 = vsel %vm418, %v420, %v416
        %v422 = vmul.f32 1.0, %v421
        %vm423 = vcmask 326656
        %424 = vst.msk [vmem:[%s272] sm:$0xff] %vm423, %v407
        %425 = vst.msk [vmem:[%s272 + $0x8] sm:$0xff] %vm423, %v422
        %s426 = sand.u32 %s181, 1
        %s427 = scalar_lea.sflag [#allocation3], %s426
        %s428 = sand.u32 %s181, 1
        %s429 = smul.addr %s428, 16
        %s430 = scalar_lea.vmem [#allocation2], %s429
        // Predicated region
        $region49: #{tpu_custom_call.1} parent=47 // pred_check
          %p431 = pneg %p191
        $region50: #{tpu_custom_call.1} parent=47 // pred_check_branch
          %433 = sbr.rel (%p431) target = $region52
        $region51: #{tpu_custom_call.1} parent=47 // pred_region
          %s434 = smul.u32 2, %s21
          %436 = vsyncadd %s427, 0
          %s437 = smul.addr %s434, 8
          %s438 = scalar_lea.hbm %s7, %s437
          %s439 = sshll.u32 %s430, 4
          %s440 = int_to_ptr.vmem [resolvable:$true] %s439
          %s441 = sshll.u32 %s438, 4
          %s442 = int_to_ptr.hbm [resolvable:$true] %s441
          %447 = dma.vmem_to_hbm [thread:$0]  %s440, 256, %s442, %s427, 128, 128, 8
        $region52: #{tpu_custom_call.1} parent=47 // pred_fallthru
          _
      $region48: #{tpu_custom_call.1} parent=5 // pred_fallthru
        _
      %p448 = scmp.le.s32.totalorder 2, %s16
      // Predicated region
      $region53: #{tpu_custom_call.1} parent=5 // pred_check
        %p449 = pneg %p448
      $region54: #{tpu_custom_call.1} parent=5 // pred_check_branch
        %451 = sbr.rel (%p449) target = $region56
      $region55: #{tpu_custom_call.1} parent=5 // pred_region
        %s452 = ssub.s32 %s16, 2
        // Predicated region
        $region57: #{tpu_custom_call.1} parent=55 // pred_check
          %p453 = pneg %p197
        $region58: #{tpu_custom_call.1} parent=55 // pred_check_branch
          %455 = sbr.rel (%p453) target = $region60
        $region59: #{tpu_custom_call.1} parent=55 // pred_region
          %s456 = sand.u32 %s182, 1
          %s457 = scalar_lea.sflag [#allocation3], %s456
          %s458 = sand.u32 %s182, 1
          %s459 = smul.addr %s458, 16
          %s460 = scalar_lea.vmem [#allocation2], %s459
          %462 = dma.done %s457, 256
        $region60: #{tpu_custom_call.1} parent=55 // pred_fallthru
          _
      $region56: #{tpu_custom_call.1} parent=5 // pred_fallthru
        _
    $region6: #{tpu_custom_call.1} parent=1 // loop_footer
      %s20 = sadd.s32 1, %s16
    $region7: #{tpu_custom_call.1} parent=1 // loop_footer_branch
      %15 = sbr.rel target = $region3
    $region8: #{tpu_custom_call.1} parent=1 // loop_exit
      _
    %463 = vsyncpa [#allocation3], 1
    %s464 = scalar_lea.sflag [#allocation3], 1
    %465 = vsyncpa %s464, 1

</llo_original>
